<compile_context>
chip_gen: v5e
topology: v5e:2x2
jax: 0.10.0
libtpu: 0.0.40
codegen_flags: <defaults>
</compile_context>

<pallas_src>
import functools

import jax
import jax.numpy as jnp
from jax.experimental import pallas as pl
from jax.experimental.pallas import tpu as pltpu


def _holiday_range_kernel(w_ref, t_ref, o_ref, *, holidays):
    """Per-tile hot path: count holiday-interval membership and scale by w.

    w_ref : SMEM ref, shape (1, 1), float32  -- the learned scalar parameter
    t_ref : VMEM ref, shape (bb, bt), float32  -- time-value tile
    o_ref : VMEM ref, shape (bb, bt), float32  -- output tile
    """
    t = t_ref[...]
    # Accumulate membership in int32 (bool add); convert to float once at end.
    count = jnp.zeros(t.shape, dtype=jnp.int32)
    # Holidays are fixed at module construction -> compile-time constants,
    # fully unrolled on the VPU.
    for lo, hi in holidays:
        inside = jnp.logical_and(lo <= t, t <= hi)
        count = count + inside.astype(jnp.int32)
    o_ref[...] = count.astype(jnp.float32) * w_ref[0, 0]


def _pick_block(dim, target):
    """Full dim if it fits the target tile, else the (8,128)-aligned target."""
    return dim if dim <= target else target


def holiday_range_forward(t, w, holidays, *, block_b=256, block_t=2048):
    """JAX wrapper around the Pallas kernel.

    t        : jnp.ndarray [B, T] float32
    w        : jnp.ndarray [1, 1] float32 (the nn.Parameter, init 0.05)
    holidays : tuple of (lower, upper) python floats
    """
    B, T = t.shape
    bb = _pick_block(B, block_b)   # multiple of 8 (or full dim)
    bt = _pick_block(T, block_t)   # multiple of 128 (or full dim), lane-dense
    grid = (pl.cdiv(B, bb), pl.cdiv(T, bt))
    kernel = functools.partial(_holiday_range_kernel, holidays=tuple(holidays))
    # NOTE: tail blocks when bb/bt do not divide B/T are padded by Pallas and
    # out-of-bounds writes are dropped, so the padded lanes never reach HBM.
    # TODO(synk): optionally pass input_output_aliases={1: 0} if `t` is dead
    # after this op to halve the HBM footprint (does not change BW).
    return pl.pallas_call(
        kernel,
        out_shape=jax.ShapeDtypeStruct((B, T), jnp.float32),
        grid=grid,
        in_specs=[
            pl.BlockSpec(memory_space=pltpu.SMEM),          # w (scalar param)
            pl.BlockSpec((bb, bt), lambda i, j: (i, j)),    # t tile
        ],
        out_specs=pl.BlockSpec((bb, bt), lambda i, j: (i, j)),
        compiler_params=pltpu.CompilerParams(
            dimension_semantics=("parallel", "parallel"),
        ),
    )(w, t)


if __name__ == "__main__":
    key = jax.random.PRNGKey(0)

    # Holiday intervals (lower, upper bounds on the time axis).
    holidays = ((2.0, 5.0), (10.0, 12.0), (20.0, 25.0))

    # Deterministic parameter init, matching nn.Parameter(torch.zeros(1) + 0.05).
    w = jnp.full((1, 1), 0.05, dtype=jnp.float32)

    def ref_fn(t):
        return sum(
            jnp.logical_and(lo <= t, t <= hi).astype(jnp.float32)
            for lo, hi in holidays
        ) * w[0, 0]

    k1, k2 = jax.random.split(key)

    # Small input: 8 batch rows x 256 time steps (single block).
    B, T = 8, 256
    t_small = jax.random.uniform(k1, (B, T), dtype=jnp.float32,
                                 minval=0.0, maxval=30.0)
    out_small = jax.block_until_ready(holiday_range_forward(t_small, w, holidays))
    assert out_small.shape == (B, T) and out_small.dtype == jnp.float32
    assert jnp.allclose(out_small, ref_fn(t_small)), "mismatch vs reference (small)"

    # Slightly larger input with smaller tiles forced, to exercise the
    # multi-block grid / pipelined path (still tiny: 64 x 4096 f32 = 1 MiB).
    t_big = jax.random.uniform(k2, (64, 4096), dtype=jnp.float32,
                               minval=0.0, maxval=30.0)
    out_big = jax.block_until_ready(
        holiday_range_forward(t_big, w, holidays, block_b=32, block_t=1024)
    )
    assert jnp.allclose(out_big, ref_fn(t_big)), "mismatch vs reference (tiled)"

    print("KERNEL_OK")
</pallas_src>

<mosaic_0001>
module attributes {stable_mosaic.version = 11 : i64} {
  func.func @_holiday_range_kernel(%arg0: i32, %arg1: i32, %arg2: memref<1x1xf32, #tpu.memory_space<smem>>, %arg3: memref<8x256xf32, #tpu.memory_space<vmem>>, %arg4: memref<8x256xf32, #tpu.memory_space<vmem>>) attributes {dimension_semantics = [#tpu.dimension_semantics<parallel>, #tpu.dimension_semantics<parallel>], iteration_bounds = array<i64: 1, 1>, scalar_prefetch = 0 : i64, scratch_operands = 0 : i64, tpu.core_type = #tpu.core_type<tc>, window_params = [{transform_indices = @transform_0, window_bounds = array<i64: 1, 1>}, {transform_indices = @transform_1, window_bounds = array<i64: 8, 256>}, {transform_indices = @transform_2, window_bounds = array<i64: 8, 256>}]} {
    %c0 = arith.constant 0 : index
    %c0_0 = arith.constant 0 : index
    %0 = vector.load %arg3[%c0, %c0_0] : memref<8x256xf32, #tpu.memory_space<vmem>>, vector<8x256xf32>
    %c0_i32 = arith.constant 0 : i32
    %1 = vector.broadcast %c0_i32 : i32 to vector<8x256xi32>
    %cst = arith.constant 2.000000e+00 : f32
    %2 = vector.broadcast %cst : f32 to vector<8x256xf32>
    %3 = arith.cmpf oge, %0, %2 : vector<8x256xf32>
    %cst_1 = arith.constant 5.000000e+00 : f32
    %4 = vector.broadcast %cst_1 : f32 to vector<8x256xf32>
    %5 = arith.cmpf ole, %0, %4 : vector<8x256xf32>
    %6 = arith.andi %3, %5 : vector<8x256xi1>
    %7 = arith.extui %6 : vector<8x256xi1> to vector<8x256xi32>
    %8 = arith.addi %1, %7 : vector<8x256xi32>
    %cst_2 = arith.constant 1.000000e+01 : f32
    %9 = vector.broadcast %cst_2 : f32 to vector<8x256xf32>
    %10 = arith.cmpf oge, %0, %9 : vector<8x256xf32>
    %cst_3 = arith.constant 1.200000e+01 : f32
    %11 = vector.broadcast %cst_3 : f32 to vector<8x256xf32>
    %12 = arith.cmpf ole, %0, %11 : vector<8x256xf32>
    %13 = arith.andi %10, %12 : vector<8x256xi1>
    %14 = arith.extui %13 : vector<8x256xi1> to vector<8x256xi32>
    %15 = arith.addi %8, %14 : vector<8x256xi32>
    %cst_4 = arith.constant 2.000000e+01 : f32
    %16 = vector.broadcast %cst_4 : f32 to vector<8x256xf32>
    %17 = arith.cmpf oge, %0, %16 : vector<8x256xf32>
    %cst_5 = arith.constant 2.500000e+01 : f32
    %18 = vector.broadcast %cst_5 : f32 to vector<8x256xf32>
    %19 = arith.cmpf ole, %0, %18 : vector<8x256xf32>
    %20 = arith.andi %17, %19 : vector<8x256xi1>
    %21 = arith.extui %20 : vector<8x256xi1> to vector<8x256xi32>
    %22 = arith.addi %15, %21 : vector<8x256xi32>
    %23 = arith.sitofp %22 : vector<8x256xi32> to vector<8x256xf32>
    %c0_6 = arith.constant 0 : index
    %c0_7 = arith.constant 0 : index
    %24 = memref.load %arg2[%c0_6, %c0_7] : memref<1x1xf32, #tpu.memory_space<smem>>
    %25 = vector.broadcast %24 : f32 to vector<8x256xf32>
    %26 = arith.mulf %23, %25 : vector<8x256xf32>
    %c0_8 = arith.constant 0 : index
    %c0_9 = arith.constant 0 : index
    %27 = vector.load %arg4[%c0_8, %c0_9] : memref<8x256xf32, #tpu.memory_space<vmem>>, vector<8x256xf32>
    tpu.vector_store %arg4[%c0_8, %c0_9], %26 {strides = array<i32>} : memref<8x256xf32, #tpu.memory_space<vmem>>, vector<8x256xf32>,
    return
  }
  func.func @transform_0(%arg0: i32, %arg1: i32) -> (i32, i32) {
    %c0_i32 = arith.constant 0 : i32
    %c0_i32_0 = arith.constant 0 : i32
    %c0_i32_1 = arith.constant 0 : i32
    return %c0_i32, %c0_i32_0 : i32, i32
  }
  func.func @transform_1(%arg0: i32, %arg1: i32) -> (i32, i32) {
    %c0_i32 = arith.constant 0 : i32
    return %arg0, %arg1 : i32, i32
  }
  func.func @transform_2(%arg0: i32, %arg1: i32) -> (i32, i32) {
    %c0_i32 = arith.constant 0 : i32
    return %arg0, %arg1 : i32, i32
  }
}

</mosaic_0001>

<llo_original>
// kernel: tpu_custom_call.1
$region0: #{tpu_custom_call.1}
  #allocation0 [shape = 'u32[]', space=smem, size = 0x4, offset = 0x4, fixed_abs, tag = 'smem constant byte address 0x4 - core index']
  #allocation1 [shape = 'u32[72,128]{1,0:T(1,128)}', space=vmem, size = 0x9000, scoped, tag = 'internal scratch']
  #allocation2 [shape = 'f32[1,1]{1,0:T(1,128)S(6)}', space=smem, size = 0x200, scoped, tag = 'scoped memory for tpu_custom_call.1']
  %s0 = inlined_call_operand.<no memory space> [shape: f32[1,1], index: 0, kind: input, shape index: {}]
  %s1 = inlined_call_operand.hbm [shape: f32[8,256], index: 1, kind: input, shape index: {}]
  %s2 = inlined_call_operand.hbm [shape: f32[8,256], index: 2, kind: output, shape index: {}]
  %s3 = sld [smem:[#allocation0]]
  $region22: #{tpu_custom_call.1} parent=0
    _
  %s5 = ssub.s32 1, %s3
  %s6 = scalar_select 0, %s5, %s3
  %7 = sst [smem:[#allocation2]] %s0
  $region1: #{tpu_custom_call.1} parent=0
    #allocation3 [shape = 'u8[8192]{0}', space=vmem, size = 0x2000, scoped, tag = 'input window, operand 1, single buffered']
    #allocation4 [shape = 's32[1]{0}', space=sflag, size = 0x4, scoped, tag = 'scoped memory for tpu_custom_call.1']
    #allocation5 [shape = 's32[1]{0}', space=sflag, size = 0x4, scoped, tag = 'scoped memory for tpu_custom_call.1']
    #allocation6 [shape = 'u8[8192]{0}', space=vmem, size = 0x2000, scoped, tag = 'output window, operand 0, single buffered']
    %8 = vsyncpa [#allocation4], 0
    %9 = vsyncpa [#allocation5], 0
    // Predicated region
    $region2: #{tpu_custom_call.1} parent=1 // pred_check
      _
    $region3: #{tpu_custom_call.1} parent=1 // pred_check_branch
      %11 = sbr.rel (0) target = $region5
    $region4: #{tpu_custom_call.1} parent=1 // pred_region
      _
    $region5: #{tpu_custom_call.1} parent=1 // pred_fallthru
      _
    // Predicated region
    $region6: #{tpu_custom_call.1} parent=1 // pred_check
      _
    $region7: #{tpu_custom_call.1} parent=1 // pred_check_branch
      %13 = sbr.rel (0) target = $region9
    $region8: #{tpu_custom_call.1} parent=1 // pred_region
      %15 = vsyncadd [#allocation4], 0
      %s17 = sshll.u32 %s1, 4
      %s18 = int_to_ptr.hbm [resolvable:$true] %s17
      %s19 = sshll.u32 [#allocation3], 4
      %s20 = int_to_ptr.vmem [resolvable:$true] %s19
      %22 = dma.hbm_to_vmem [thread:$0]  %s18, 256, %s20, [#allocation4]
    $region9: #{tpu_custom_call.1} parent=1 // pred_fallthru
      _
    // Predicated region
    $region10: #{tpu_custom_call.1} parent=1 // pred_check
      _
    $region11: #{tpu_custom_call.1} parent=1 // pred_check_branch
      %24 = sbr.rel (0) target = $region13
    $region12: #{tpu_custom_call.1} parent=1 // pred_region
      %26 = dma.done [#allocation4], 256
    $region13: #{tpu_custom_call.1} parent=1 // pred_fallthru
      _
    %v27 = vld [vmem:[#allocation3] sm:$0xff]
    %v28 = vld [vmem:[#allocation3 + $0x8] sm:$0xff]
    %vm29 = vcmp.ge.f32.partialorder %v27, 2.0
    %vm30 = vcmp.ge.f32.partialorder %v28, 2.0
    %vm31 = vcmp.le.f32.partialorder %v27, 5.0
    %vm32 = vcmp.le.f32.partialorder %v28, 5.0
    %vm33 = vmand %vm29, %vm31
    %vm34 = vmand %vm30, %vm32
    %v35 = vsel %vm33, 1, 0
    %v36 = vsel %vm34, 1, 0
    %vm37 = vcmp.ge.f32.partialorder %v27, 10.0
    %vm38 = vcmp.ge.f32.partialorder %v28, 10.0
    %vm39 = vcmp.le.f32.partialorder %v27, 12.0
    %vm40 = vcmp.le.f32.partialorder %v28, 12.0
    %vm41 = vmand %vm37, %vm39
    %vm42 = vmand %vm38, %vm40
    %v43 = vsel %vm41, 1, 0
    %v44 = vsel %vm42, 1, 0
    %v45 = vadd.s32 %v35, %v43
    %v46 = vadd.s32 %v36, %v44
    %vm47 = vcmp.ge.f32.partialorder %v27, 20.0
    %vm48 = vcmp.ge.f32.partialorder %v28, 20.0
    %vm49 = vcmp.le.f32.partialorder %v27, 25.0
    %vm50 = vcmp.le.f32.partialorder %v28, 25.0
    %vm51 = vmand %vm47, %vm49
    %vm52 = vmand %vm48, %vm50
    %v53 = vsel %vm51, 1, 0
    %v54 = vsel %vm52, 1, 0
    %v55 = vadd.s32 %v45, %v53
    %v56 = vadd.s32 %v46, %v54
    %v57 = vcvt.s32.f32 %v55
    %v58 = vcvt.s32.f32 %v56
    %s59 = sld [smem:[#allocation2]]
    %v60 = vstv %s59
    %v61 = vmul.f32 %v57, %v60
    %v62 = vmul.f32 %v58, %v60
    %63 = vst [vmem:[#allocation6] sm:$0xff] %v61
    %64 = vst [vmem:[#allocation6 + $0x8] sm:$0xff] %v62
    // Predicated region
    $region14: #{tpu_custom_call.1} parent=1 // pred_check
      _
    $region15: #{tpu_custom_call.1} parent=1 // pred_check_branch
      %66 = sbr.rel (0) target = $region17
    $region16: #{tpu_custom_call.1} parent=1 // pred_region
      %68 = vsyncadd [#allocation5], 0
      %s70 = sshll.u32 [#allocation6], 4
      %s71 = int_to_ptr.vmem [resolvable:$true] %s70
      %s72 = sshll.u32 %s2, 4
      %s73 = int_to_ptr.hbm [resolvable:$true] %s72
      %75 = dma.vmem_to_hbm [thread:$0]  %s71, 256, %s73, [#allocation5]
    $region17: #{tpu_custom_call.1} parent=1 // pred_fallthru
      _
    // Predicated region
    $region18: #{tpu_custom_call.1} parent=1 // pred_check
      _
    $region19: #{tpu_custom_call.1} parent=1 // pred_check_branch
      %77 = sbr.rel (0) target = $region21
    $region20: #{tpu_custom_call.1} parent=1 // pred_region
      %79 = dma.done [#allocation5], 256
    $region21: #{tpu_custom_call.1} parent=1 // pred_fallthru
      _
    %80 = vsyncpa [#allocation4], 1
    %81 = vsyncpa [#allocation5], 1

</llo_original>
